<compile_context>
chip_gen: v6e
topology: v6e:2x2x1
jax: 0.10.0
libtpu: 0.0.40
codegen_flags: <defaults>
</compile_context>

<pallas_src>
import jax
import jax.numpy as jnp
from jax.experimental import pallas as pl
from jax.experimental.pallas import tpu as pltpu

# ---- CustomCNN-consistent (small) configuration -----------------------------
N = 2          # batch
C_IN = 3       # input_channels
F = 8          # num_filters
KH = KW = 3    # filter_size (padding=1 -> "same")
IMG = 16       # input_image_size
POOL = 2       # pool_size / stride
HID = 32       # hidden_size
NCLS = 10      # num_classes
EPS = 1e-5     # BatchNorm eps

HP = IMG // POOL              # spatial size after 2x2 max-pool (8)
HW = IMG * IMG                # conv pixels per image (256)
PP = HP * HP                  # pooled pixels per image (64)
K_IM2COL = C_IN * KH * KW     # im2col contraction size (27)
K_AUG = K_IM2COL + 1          # + ones row carrying the folded conv shift (28)
CONV_OUT = F * PP             # flattened conv feature size (512)

# Row layout of the packed FC parameter block fc_pack, shape (2*HID+3, HID).
ROW_W2 = 0                    # rows [0, HID)     : fc2 weight (BN1d folded)
ROW_W3 = HID                  # rows [HID, 2*HID) : fc3 weight, cols >= NCLS zero
ROW_B1 = 2 * HID              # row  2*HID        : fc1 bias
ROW_B2 = 2 * HID + 1          # row  2*HID+1      : fc2 bias (BN1d folded)
ROW_B3 = 2 * HID + 2          # row  2*HID+2      : fc3 bias (cols >= NCLS zero)
FC_ROWS = 2 * HID + 3


# ---------------------------------------------------------------------------
# Fused kernel: conv(3x3,pad=1)+bias+BN2d + ReLU + MaxPool2d(2) + flatten(NCHW)
#               + Linear + Linear(+BN1d) + ReLU + Linear
# Whole forward in VMEM, single invocation (no grid).
# ---------------------------------------------------------------------------
def fused_forward_kernel(patches_ref, wm_ref, w1r_ref, fc_ref, o_ref):
    # patches_ref: (28, N*256)  im2col'd padded input + a row of ones;
    #              column order: n*256 + (dh*2+dw)*64 + ph*8 + pw
    # wm_ref:      (F, 28)      conv weights * BN2d scale; col 27 = folded shift
    # w1r_ref:     (F, 64, HID) fc1 weight, input index f*64 + ph*8 + pw
    # fc_ref:      (67, HID)    packed fc2/fc3 weights + the three biases
    # o_ref:       (N, NCLS)
    fc = fc_ref[...]

    # conv + bias + BatchNorm2d(eval) as ONE K=28 matmul, then ReLU.
    y = jnp.dot(wm_ref[...], patches_ref[...],
                preferred_element_type=jnp.float32)           # (F, N*256)
    y = jnp.maximum(y, 0.0)

    # 2x2 max-pool: the 4 pool-window slots are contiguous 64-lane slices.
    pooled = []
    for n in range(N):
        b = n * HW
        pooled.append(jnp.maximum(
            jnp.maximum(y[:, b:b + PP], y[:, b + PP:b + 2 * PP]),
            jnp.maximum(y[:, b + 2 * PP:b + 3 * PP],
                        y[:, b + 3 * PP:b + 4 * PP])))        # (F, 64) each
    pooled3 = jnp.stack(pooled, axis=1)                       # (F, N, 64)

    # FC1 as a single batched contraction over pooled pixels (batch = filter),
    # then an 8-way leading-dim reduction (7 VPU adds).
    part = jnp.einsum("fnp,fph->fnh", pooled3, w1r_ref[...],
                      preferred_element_type=jnp.float32)     # (F, N, HID)
    h = jnp.sum(part, axis=0) + fc[ROW_B1:ROW_B1 + 1, :]      # (N, HID)

    # FC2 (+ folded BatchNorm1d) + ReLU (+ Dropout = identity) + FC3.
    # TODO(synk): training-mode Dropout / batch-stat BatchNorm not implemented.
    h = jnp.dot(h, fc[ROW_W2:ROW_W2 + HID, :],
                preferred_element_type=jnp.float32) + fc[ROW_B2:ROW_B2 + 1, :]
    h = jnp.maximum(h, 0.0)
    o_ref[...] = (jnp.dot(h, fc[ROW_W3:ROW_W3 + HID, 0:NCLS],
                          preferred_element_type=jnp.float32)
                  + fc[ROW_B3:ROW_B3 + 1, 0:NCLS])


def fused_forward(patches, wm_aug, w1r, fc_pack):
    vmem = pl.BlockSpec(memory_space=pltpu.MemorySpace.VMEM)
    return pl.pallas_call(
        fused_forward_kernel,
        out_shape=jax.ShapeDtypeStruct((N, NCLS), jnp.float32),
        in_specs=[vmem, vmem, vmem, vmem],
        out_specs=vmem,
    )(patches, wm_aug, w1r, fc_pack)


# ---------------------------------------------------------------------------
# XLA glue: pad + im2col with a pool-friendly, NCHW-flatten-friendly column
# ordering, plus a ones row that carries the folded conv bias / BN2d shift.
# Pure data movement on a ~7 KB input, fused under the same jit.
# ---------------------------------------------------------------------------
def _im2col_aug(x_nchw):
    xp = jnp.pad(x_nchw, ((0, 0), (0, 0), (1, 1), (1, 1)))          # (N,C,18,18)
    wins = jnp.stack(
        [xp[:, :, kh:kh + IMG, kw:kw + IMG]
         for kh in range(KH) for kw in range(KW)], axis=2)          # (N,C,9,16,16)
    wins = wins.reshape(N, C_IN, KH * KW, HP, POOL, HP, POOL)        # ...,ph,dh,pw,dw
    wins = jnp.transpose(wins, (1, 2, 0, 4, 6, 3, 5))                # C,9,N,dh,dw,ph,pw
    patches = wins.reshape(K_IM2COL, N * HW)                         # (27, 512)
    ones = jnp.ones((1, N * HW), jnp.float32)
    return jnp.concatenate([patches, ones], axis=0)                  # (28, 512)


@jax.jit
def custom_cnn_forward(x_nchw, params):
    patches = _im2col_aug(x_nchw)
    return fused_forward(patches, params["wm_aug"], params["w1r"], params["fc_pack"])


# ---------------------------------------------------------------------------
# Parameters (synthetic, deterministic) + host-side folding / packing.
# ---------------------------------------------------------------------------
def init_raw_params(key):
    ks = jax.random.split(key, 16)
    r = {}
    r["conv_w"] = 0.1 * jax.random.normal(ks[0], (F, C_IN, KH, KW), jnp.float32)
    r["conv_b"] = 0.1 * jax.random.normal(ks[1], (F,), jnp.float32)
    r["g2"] = 1.0 + 0.1 * jax.random.normal(ks[2], (F,), jnp.float32)
    r["be2"] = 0.1 * jax.random.normal(ks[3], (F,), jnp.float32)
    r["m2"] = 0.1 * jax.random.normal(ks[4], (F,), jnp.float32)
    r["v2"] = 1.0 + 0.1 * jnp.abs(jax.random.normal(ks[5], (F,), jnp.float32))
    r["w1"] = 0.05 * jax.random.normal(ks[6], (CONV_OUT, HID), jnp.float32)
    r["b1"] = 0.05 * jax.random.normal(ks[7], (HID,), jnp.float32)
    r["w2"] = 0.05 * jax.random.normal(ks[8], (HID, HID), jnp.float32)
    r["b2"] = 0.05 * jax.random.normal(ks[9], (HID,), jnp.float32)
    r["g1"] = 1.0 + 0.1 * jax.random.normal(ks[10], (HID,), jnp.float32)
    r["be1"] = 0.1 * jax.random.normal(ks[11], (HID,), jnp.float32)
    r["m1"] = 0.1 * jax.random.normal(ks[12], (HID,), jnp.float32)
    r["v1"] = 1.0 + 0.1 * jnp.abs(jax.random.normal(ks[13], (HID,), jnp.float32))
    r["w3"] = 0.05 * jax.random.normal(ks[14], (HID, NCLS), jnp.float32)
    r["b3"] = 0.05 * jax.random.normal(ks[15], (NCLS,), jnp.float32)
    return r


def pack_params(r):
    # Conv: fold BN2d scale into the weights; bias + BN shift into one column
    # that multiplies the im2col ones row.
    s2 = r["g2"] / jnp.sqrt(r["v2"] + EPS)
    wm = r["conv_w"].reshape(F, K_IM2COL) * s2[:, None]
    shift = ((r["conv_b"] - r["m2"]) * s2 + r["be2"])[:, None]
    wm_aug = jnp.concatenate([wm, shift], axis=1)                    # (F, 28)

    # FC1 weight (in, out), input index f*64 + ph*8 + pw (torch NCHW flatten).
    w1r = r["w1"].reshape(F, PP, HID)                                # (F, 64, HID)

    # Fold BatchNorm1d into fc2; pack fc2/fc3 weights + biases into one block.
    s1 = r["g1"] / jnp.sqrt(r["v1"] + EPS)
    w2f = r["w2"] * s1[None, :]
    b2f = r["b2"] * s1 + (r["be1"] - r["m1"] * s1)
    w3p = jnp.zeros((HID, HID), jnp.float32).at[:, :NCLS].set(r["w3"])
    b3p = jnp.zeros((HID,), jnp.float32).at[:NCLS].set(r["b3"])
    fc_pack = jnp.concatenate(
        [w2f, w3p, r["b1"][None, :], b2f[None, :], b3p[None, :]], axis=0)
    assert fc_pack.shape == (FC_ROWS, HID)
    return {"wm_aug": wm_aug, "w1r": w1r, "fc_pack": fc_pack}


def reference_forward(x, r):
    """Pure-JAX eval-mode forward with unfolded params (numerical check)."""
    y = jax.lax.conv_general_dilated(
        x, r["conv_w"], window_strides=(1, 1), padding=((1, 1), (1, 1)),
        dimension_numbers=("NCHW", "OIHW", "NCHW"))
    c = lambda v: v[None, :, None, None]
    y = y + c(r["conv_b"])
    y = (y - c(r["m2"])) / jnp.sqrt(c(r["v2"]) + EPS) * c(r["g2"]) + c(r["be2"])
    y = jnp.maximum(y, 0.0)
    y = jax.lax.reduce_window(y, -jnp.inf, jax.lax.max,
                              (1, 1, POOL, POOL), (1, 1, POOL, POOL), "VALID")
    h = y.reshape(N, -1)
    h = h @ r["w1"] + r["b1"]
    h = h @ r["w2"] + r["b2"]
    h = (h - r["m1"]) / jnp.sqrt(r["v1"] + EPS) * r["g1"] + r["be1"]
    h = jnp.maximum(h, 0.0)
    return h @ r["w3"] + r["b3"]


if __name__ == "__main__":
    key = jax.random.PRNGKey(0)
    k_x, k_p = jax.random.split(key)
    x = jax.random.normal(k_x, (N, C_IN, IMG, IMG), jnp.float32)
    raw = init_raw_params(k_p)
    params = pack_params(raw)

    out = custom_cnn_forward(x, params)
    out = jax.block_until_ready(out)

    assert out.shape == (N, NCLS), out.shape
    assert bool(jnp.all(jnp.isfinite(out)))
    ref = reference_forward(x, raw)
    assert bool(jnp.allclose(out, ref, atol=1e-4, rtol=1e-4)), \
        float(jnp.max(jnp.abs(out - ref)))
    print("KERNEL_OK")
</pallas_src>

<mosaic_0001>
module attributes {stable_mosaic.version = 11 : i64} {
  func.func @fused_forward_kernel(%arg0: memref<28x512xf32, #tpu.memory_space<vmem>>, %arg1: memref<8x28xf32, #tpu.memory_space<vmem>>, %arg2: memref<8x64x32xf32, #tpu.memory_space<vmem>>, %arg3: memref<67x32xf32, #tpu.memory_space<vmem>>, %arg4: memref<2x10xf32, #tpu.memory_space<vmem>>) attributes {dimension_semantics = [], scalar_prefetch = 0 : i64, scratch_operands = 0 : i64, tpu.core_type = #tpu.core_type<tc>} {
    %c0 = arith.constant 0 : index
    %c0_0 = arith.constant 0 : index
    %0 = vector.load %arg3[%c0, %c0_0] : memref<67x32xf32, #tpu.memory_space<vmem>>, vector<67x32xf32>
    %c0_1 = arith.constant 0 : index
    %c0_2 = arith.constant 0 : index
    %1 = vector.load %arg1[%c0_1, %c0_2] : memref<8x28xf32, #tpu.memory_space<vmem>>, vector<8x28xf32>
    %c0_3 = arith.constant 0 : index
    %c0_4 = arith.constant 0 : index
    %2 = vector.load %arg0[%c0_3, %c0_4] : memref<28x512xf32, #tpu.memory_space<vmem>>, vector<28x512xf32>
    %cst = arith.constant dense<0.000000e+00> : vector<8x512xf32>
    %3 = tpu.matmul %1, %2, %cst {dimension_numbers = #tpu.dot_dimension_numbers<[1], [0], [0], [1], [0, 0, 1, 1], [], []>} : vector<8x28xf32>, vector<28x512xf32>, vector<8x512xf32> -> vector<8x512xf32>
    %cst_5 = arith.constant 0.000000e+00 : f32
    %4 = vector.broadcast %cst_5 : f32 to vector<8x512xf32>
    %5 = arith.maximumf %3, %4 : vector<8x512xf32>
    %6 = vector.extract_strided_slice %5 {offsets = [0, 0], sizes = [8, 64], strides = [1, 1]} : vector<8x512xf32> to vector<8x64xf32>
    %7 = vector.extract_strided_slice %5 {offsets = [0, 64], sizes = [8, 64], strides = [1, 1]} : vector<8x512xf32> to vector<8x64xf32>
    %8 = arith.maximumf %6, %7 : vector<8x64xf32>
    %9 = vector.extract_strided_slice %5 {offsets = [0, 128], sizes = [8, 64], strides = [1, 1]} : vector<8x512xf32> to vector<8x64xf32>
    %10 = vector.extract_strided_slice %5 {offsets = [0, 192], sizes = [8, 64], strides = [1, 1]} : vector<8x512xf32> to vector<8x64xf32>
    %11 = arith.maximumf %9, %10 : vector<8x64xf32>
    %12 = arith.maximumf %8, %11 : vector<8x64xf32>
    %13 = vector.extract_strided_slice %5 {offsets = [0, 256], sizes = [8, 64], strides = [1, 1]} : vector<8x512xf32> to vector<8x64xf32>
    %14 = vector.extract_strided_slice %5 {offsets = [0, 320], sizes = [8, 64], strides = [1, 1]} : vector<8x512xf32> to vector<8x64xf32>
    %15 = arith.maximumf %13, %14 : vector<8x64xf32>
    %16 = vector.extract_strided_slice %5 {offsets = [0, 384], sizes = [8, 64], strides = [1, 1]} : vector<8x512xf32> to vector<8x64xf32>
    %17 = vector.extract_strided_slice %5 {offsets = [0, 448], sizes = [8, 64], strides = [1, 1]} : vector<8x512xf32> to vector<8x64xf32>
    %18 = arith.maximumf %16, %17 : vector<8x64xf32>
    %19 = arith.maximumf %15, %18 : vector<8x64xf32>
    %20 = vector.shape_cast %12 : vector<8x64xf32> to vector<8x1x64xf32>
    %21 = vector.shape_cast %19 : vector<8x64xf32> to vector<8x1x64xf32>
    %22 = tpu.concatenate %20, %21 in 1 : vector<8x1x64xf32>, vector<8x1x64xf32> -> vector<8x2x64xf32>
    %c0_6 = arith.constant 0 : index
    %c0_7 = arith.constant 0 : index
    %c0_8 = arith.constant 0 : index
    %23 = vector.load %arg2[%c0_6, %c0_7, %c0_8] : memref<8x64x32xf32, #tpu.memory_space<vmem>>, vector<8x64x32xf32>
    "tpu.trace_start"() <{level = 10 : i32, message = "fnp,fph->fnh"}> : () -> ()
    %cst_9 = arith.constant dense<0.000000e+00> : vector<8x2x32xf32>
    %24 = tpu.matmul %22, %23, %cst_9 {dimension_numbers = #tpu.dot_dimension_numbers<[2], [1], [1], [2], [0, 0, 0, 1, 1, 2], [0], [0]>} : vector<8x2x64xf32>, vector<8x64x32xf32>, vector<8x2x32xf32> -> vector<8x2x32xf32>
    "tpu.trace_stop"() : () -> ()
    %cst_10 = arith.constant dense<0.000000e+00> : vector<2x32xf32>
    %25 = vector.multi_reduction <add>, %24, %cst_10 [0] : vector<8x2x32xf32> to vector<2x32xf32>
    %26 = vector.extract_strided_slice %0 {offsets = [64, 0], sizes = [1, 32], strides = [1, 1]} : vector<67x32xf32> to vector<1x32xf32>
    %27 = vector.broadcast %26 : vector<1x32xf32> to vector<2x32xf32>
    %28 = arith.addf %25, %27 : vector<2x32xf32>
    %29 = vector.extract_strided_slice %0 {offsets = [0, 0], sizes = [32, 32], strides = [1, 1]} : vector<67x32xf32> to vector<32x32xf32>
    %cst_11 = arith.constant dense<0.000000e+00> : vector<2x32xf32>
    %30 = tpu.matmul %28, %29, %cst_11 {dimension_numbers = #tpu.dot_dimension_numbers<[1], [0], [0], [1], [0, 0, 1, 1], [], []>} : vector<2x32xf32>, vector<32x32xf32>, vector<2x32xf32> -> vector<2x32xf32>
    %31 = vector.extract_strided_slice %0 {offsets = [65, 0], sizes = [1, 32], strides = [1, 1]} : vector<67x32xf32> to vector<1x32xf32>
    %32 = vector.broadcast %31 : vector<1x32xf32> to vector<2x32xf32>
    %33 = arith.addf %30, %32 : vector<2x32xf32>
    %cst_12 = arith.constant 0.000000e+00 : f32
    %34 = vector.broadcast %cst_12 : f32 to vector<2x32xf32>
    %35 = arith.maximumf %33, %34 : vector<2x32xf32>
    %36 = vector.extract_strided_slice %0 {offsets = [32, 0], sizes = [32, 10], strides = [1, 1]} : vector<67x32xf32> to vector<32x10xf32>
    %cst_13 = arith.constant dense<0.000000e+00> : vector<2x10xf32>
    %37 = tpu.matmul %35, %36, %cst_13 {dimension_numbers = #tpu.dot_dimension_numbers<[1], [0], [0], [1], [0, 0, 1, 1], [], []>} : vector<2x32xf32>, vector<32x10xf32>, vector<2x10xf32> -> vector<2x10xf32>
    %38 = vector.extract_strided_slice %0 {offsets = [66, 0], sizes = [1, 10], strides = [1, 1]} : vector<67x32xf32> to vector<1x10xf32>
    %39 = vector.broadcast %38 : vector<1x10xf32> to vector<2x10xf32>
    %40 = arith.addf %37, %39 : vector<2x10xf32>
    %c0_14 = arith.constant 0 : index
    %c0_15 = arith.constant 0 : index
    %41 = vector.load %arg4[%c0_14, %c0_15] : memref<2x10xf32, #tpu.memory_space<vmem>>, vector<2x10xf32>
    tpu.vector_store %arg4[%c0_14, %c0_15], %40 {strides = array<i32>} : memref<2x10xf32, #tpu.memory_space<vmem>>, vector<2x10xf32>,
    return
  }
}

</mosaic_0001>

<llo_original>
// kernel: custom_cnn_forward.1
$region0: #{custom_cnn_forward.1}
  #allocation0 [shape = 'u32[]', space=smem, size = 0x4, offset = 0x4, fixed_abs, tag = 'smem constant byte address 0x4 - core index']
  #allocation1 [shape = 'u32[144,128]{1,0:T(1,128)}', space=vmem, size = 0x12000, scoped, tag = 'internal scratch']
  %s0 = inlined_call_operand.vmem [shape: f32[28,512], index: 0, kind: input, shape index: {}]
  %s1 = inlined_call_operand.vmem [shape: f32[8,28], index: 1, kind: input, shape index: {}]
  %s2 = inlined_call_operand.vmem [shape: f32[8,64,32], index: 2, kind: input, shape index: {}]
  %s3 = inlined_call_operand.vmem [shape: f32[67,32], index: 3, kind: input, shape index: {}]
  %s4 = inlined_call_operand.hbm [shape: f32[2,10], index: 4, kind: output, shape index: {}]
  %s5 = sld [smem:[#allocation0]]
  $region26: #{custom_cnn_forward.1} parent=0
    _
  %s7 = ssub.s32 1, %s5
  %s8 = scalar_select 0, %s7, %s5
  $region1: #{custom_cnn_forward.1} parent=0
    #allocation2 [shape = 'u8[1024]{0}', space=vmem, size = 0x400, scoped, tag = 'output window, operand 0, single buffered']
    #allocation3 [shape = 's32[1]{0}', space=sflag, size = 0x4, scoped, tag = 'scoped memory for custom_cnn_forward.1']
    %9 = vsyncpa [#allocation3], 0
    // Predicated region
    $region2: #{custom_cnn_forward.1} parent=1 // pred_check
      _
    $region3: #{custom_cnn_forward.1} parent=1 // pred_check_branch
      %11 = sbr.rel (0) target = $region5
    $region4: #{custom_cnn_forward.1} parent=1 // pred_region
      _
    $region5: #{custom_cnn_forward.1} parent=1 // pred_fallthru
      _
    // Predicated region
    $region6: #{custom_cnn_forward.1} parent=1 // pred_check
      _
    $region7: #{custom_cnn_forward.1} parent=1 // pred_check_branch
      %13 = sbr.rel (0) target = $region9
    $region8: #{custom_cnn_forward.1} parent=1 // pred_region
      _
    $region9: #{custom_cnn_forward.1} parent=1 // pred_fallthru
      _
    // Predicated region
    $region10: #{custom_cnn_forward.1} parent=1 // pred_check
      _
    $region11: #{custom_cnn_forward.1} parent=1 // pred_check_branch
      %15 = sbr.rel (0) target = $region13
    $region12: #{custom_cnn_forward.1} parent=1 // pred_region
      _
    $region13: #{custom_cnn_forward.1} parent=1 // pred_fallthru
      _
    // Predicated region
    $region14: #{custom_cnn_forward.1} parent=1 // pred_check
      _
    $region15: #{custom_cnn_forward.1} parent=1 // pred_check_branch
      %17 = sbr.rel (0) target = $region17
    $region16: #{custom_cnn_forward.1} parent=1 // pred_region
      _
    $region17: #{custom_cnn_forward.1} parent=1 // pred_fallthru
      _
    %v18 = vld [vmem:[%s3] sm:$0xff]
    %v19 = vld [vmem:[%s3 + $0x8] sm:$0xff]
    %v20 = vld [vmem:[%s3 + $0x10] sm:$0xff]
    %v21 = vld [vmem:[%s3 + $0x18] sm:$0xff]
    %v22 = vld [vmem:[%s3 + $0x20] sm:$0xff]
    %v23 = vld [vmem:[%s3 + $0x28] sm:$0xff]
    %v24 = vld [vmem:[%s3 + $0x30] sm:$0xff]
    %v25 = vld [vmem:[%s3 + $0x38] sm:$0xff]
    %v26 = vld [vmem:[%s3 + $0x40] sm:$0x7]
    %v27 = vld [vmem:[%s1] sm:$0xff]
    %v28 = vld [vmem:[%s0] sm:$0xff]
    %v29 = vld [vmem:[%s0 + $0x8] sm:$0xff]
    %v30 = vld [vmem:[%s0 + $0x10] sm:$0xff]
    %v31 = vld [vmem:[%s0 + $0x18] sm:$0xff]
    %v32 = vld [vmem:[%s0 + $0x20] sm:$0xff]
    %v33 = vld [vmem:[%s0 + $0x28] sm:$0xff]
    %v34 = vld [vmem:[%s0 + $0x30] sm:$0xff]
    %v35 = vld [vmem:[%s0 + $0x38] sm:$0xff]
    %v36 = vld [vmem:[%s0 + $0x40] sm:$0xff]
    %v37 = vld [vmem:[%s0 + $0x48] sm:$0xff]
    %v38 = vld [vmem:[%s0 + $0x50] sm:$0xff]
    %v39 = vld [vmem:[%s0 + $0x58] sm:$0xff]
    %v40 = vld [vmem:[%s0 + $0x60] sm:$0xf]
    %v41 = vld [vmem:[%s0 + $0x68] sm:$0xf]
    %v42 = vld [vmem:[%s0 + $0x70] sm:$0xf]
    %v43 = vld [vmem:[%s0 + $0x78] sm:$0xf]
    %vm44 = vcmask 228352
    %v46 = vsel %vm44, %v27, 0
    %vm48 = vcmask 1043456
    %v50 = vsel %vm48, %v40, 0
    %v53 = vsel %vm48, %v41, 0
    %v56 = vsel %vm48, %v42, 0
    %v59 = vsel %vm48, %v43, 0
    %61 = vmatprep.subr.mxu0 0.0
    %62 = vmatpush1.msra.mxu0 0.0
    %63 = vmatprep.subr.mxu0 0.0
    %64 = vmatpush1.msra.mxu0 0.0
    %65 = vmatprep.subr.mxu0 0.0
    %66 = vmatpush1.msra.mxu0 0.0
    %67 = vmatprep.subr.mxu0 0.0
    %68 = vmatpush1.msra.mxu0 0.0
    %69 = vmatprep.subr.mxu0 0.0
    %70 = vmatpush1.msra.mxu0 0.0
    %71 = vmatprep.subr.mxu0 0.0
    %72 = vmatpush1.msra.mxu0 0.0
    %73 = vmatprep.subr.mxu0 0.0
    %74 = vmatpush1.msra.mxu0 0.0
    %75 = vmatprep.subr.mxu0 0.0
    %76 = vmatpush1.msra.mxu0 0.0
    %77 = vmatprep.subr.mxu0 0.0
    %78 = vmatpush1.msra.mxu0 0.0
    %79 = vmatprep.subr.mxu0 0.0
    %80 = vmatpush1.msra.mxu0 0.0
    %81 = vmatprep.subr.mxu0 0.0
    %82 = vmatpush1.msra.mxu0 0.0
    %83 = vmatprep.subr.mxu0 0.0
    %84 = vmatpush1.msra.mxu0 0.0
    %85 = vmatprep.subr.mxu0 %v53
    %86 = vmatpush1.msra.mxu0 %v50
    %87 = vmatprep.subr.mxu0 %v37
    %88 = vmatpush1.msra.mxu0 %v36
    %89 = vmatprep.subr.mxu0 %v33
    %90 = vmatpush1.msra.mxu0 %v32
    %91 = vmatprep.subr.mxu0 %v29
    %92 = vmatpush1.msra.mxu0 %v28
    %93 = vmatprep.subr.mxu0 0.0
    %94 = vmatpush2.msra.mxu0 0.0
    %95 = vmatprep.subr.mxu0 0.0
    %96 = vmatpush2.msra.mxu0 0.0
    %97 = vmatprep.subr.mxu0 0.0
    %98 = vmatpush2.msra.mxu0 0.0
    %99 = vmatprep.subr.mxu0 0.0
    %100 = vmatpush2.msra.mxu0 0.0
    %101 = vmatprep.subr.mxu0 0.0
    %102 = vmatpush2.msra.mxu0 0.0
    %103 = vmatprep.subr.mxu0 0.0
    %104 = vmatpush2.msra.mxu0 0.0
    %105 = vmatprep.subr.mxu0 0.0
    %106 = vmatpush2.msra.mxu0 0.0
    %107 = vmatprep.subr.mxu0 0.0
    %108 = vmatpush2.msra.mxu0 0.0
    %109 = vmatprep.subr.mxu0 0.0
    %110 = vmatpush2.msra.mxu0 0.0
    %111 = vmatprep.subr.mxu0 0.0
    %112 = vmatpush2.msra.mxu0 0.0
    %113 = vmatprep.subr.mxu0 0.0
    %114 = vmatpush2.msra.mxu0 0.0
    %115 = vmatprep.subr.mxu0 0.0
    %116 = vmatpush2.msra.mxu0 0.0
    %117 = vmatprep.subr.mxu0 0.0
    %118 = vmatpush2.msra.mxu0 0.0
    %119 = vmatprep.subr.mxu0 0.0
    %120 = vmatpush2.msra.mxu0 0.0
    %121 = vmatprep.subr.mxu0 0.0
    %122 = vmatpush2.msra.mxu0 0.0
    %123 = vmatprep.subr.mxu0 0.0
    %124 = vmatpush2.msra.mxu0 0.0
    %125 = vmatprep.mubr.f32.mxu0 0.0
    %126 = vmatmul.mubr.f32.gmra.mxu0 %v46
    %v127 = vpop.f32.mrf.mxu0
    %v128 = vadd.f32 0.0, %v127
    %v129 = vpop.f32.mrf.mxu0
    %v130 = vadd.f32 0.0, %v129
    %131 = vdwg.mxu0
    %132 = vmatprep.subr.mxu0 0.0
    %133 = vmatpush1.msra.mxu0 0.0
    %134 = vmatprep.subr.mxu0 0.0
    %135 = vmatpush1.msra.mxu0 0.0
    %136 = vmatprep.subr.mxu0 0.0
    %137 = vmatpush1.msra.mxu0 0.0
    %138 = vmatprep.subr.mxu0 0.0
    %139 = vmatpush1.msra.mxu0 0.0
    %140 = vmatprep.subr.mxu0 0.0
    %141 = vmatpush1.msra.mxu0 0.0
    %142 = vmatprep.subr.mxu0 0.0
    %143 = vmatpush1.msra.mxu0 0.0
    %144 = vmatprep.subr.mxu0 0.0
    %145 = vmatpush1.msra.mxu0 0.0
    %146 = vmatprep.subr.mxu0 0.0
    %147 = vmatpush1.msra.mxu0 0.0
    %148 = vmatprep.subr.mxu0 0.0
    %149 = vmatpush1.msra.mxu0 0.0
    %150 = vmatprep.subr.mxu0 0.0
    %151 = vmatpush1.msra.mxu0 0.0
    %152 = vmatprep.subr.mxu0 0.0
    %153 = vmatpush1.msra.mxu0 0.0
    %154 = vmatprep.subr.mxu0 0.0
    %155 = vmatpush1.msra.mxu0 0.0
    %156 = vmatprep.subr.mxu0 %v59
    %157 = vmatpush1.msra.mxu0 %v56
    %158 = vmatprep.subr.mxu0 %v39
    %159 = vmatpush1.msra.mxu0 %v38
    %160 = vmatprep.subr.mxu0 %v35
    %161 = vmatpush1.msra.mxu0 %v34
    %162 = vmatprep.subr.mxu0 %v31
    %163 = vmatpush1.msra.mxu0 %v30
    %164 = vmatprep.subr.mxu0 0.0
    %165 = vmatpush2.msra.mxu0 0.0
    %166 = vmatprep.subr.mxu0 0.0
    %167 = vmatpush2.msra.mxu0 0.0
    %168 = vmatprep.subr.mxu0 0.0
    %169 = vmatpush2.msra.mxu0 0.0
    %170 = vmatprep.subr.mxu0 0.0
    %171 = vmatpush2.msra.mxu0 0.0
    %172 = vmatprep.subr.mxu0 0.0
    %173 = vmatpush2.msra.mxu0 0.0
    %174 = vmatprep.subr.mxu0 0.0
    %175 = vmatpush2.msra.mxu0 0.0
    %176 = vmatprep.subr.mxu0 0.0
    %177 = vmatpush2.msra.mxu0 0.0
    %178 = vmatprep.subr.mxu0 0.0
    %179 = vmatpush2.msra.mxu0 0.0
    %180 = vmatprep.subr.mxu0 0.0
    %181 = vmatpush2.msra.mxu0 0.0
    %182 = vmatprep.subr.mxu0 0.0
    %183 = vmatpush2.msra.mxu0 0.0
    %184 = vmatprep.subr.mxu0 0.0
    %185 = vmatpush2.msra.mxu0 0.0
    %186 = vmatprep.subr.mxu0 0.0
    %187 = vmatpush2.msra.mxu0 0.0
    %188 = vmatprep.subr.mxu0 0.0
    %189 = vmatpush2.msra.mxu0 0.0
    %190 = vmatprep.subr.mxu0 0.0
    %191 = vmatpush2.msra.mxu0 0.0
    %192 = vmatprep.subr.mxu0 0.0
    %193 = vmatpush2.msra.mxu0 0.0
    %194 = vmatprep.subr.mxu0 0.0
    %195 = vmatpush2.msra.mxu0 0.0
    %196 = vmatprep.mubr.f32.mxu0 0.0
    %197 = vmatmul.mubr.f32.gmra.mxu0 %v46
    %v198 = vpop.f32.mrf.mxu0
    %v199 = vadd.f32 0.0, %v198
    %v200 = vpop.f32.mrf.mxu0
    %v201 = vadd.f32 0.0, %v200
    %202 = vdwg.mxu0
    %v203 = vmax.f32 %v128, 0.0
    %v204 = vmax.f32 %v130, 0.0
    %v205 = vmax.f32 %v199, 0.0
    %v206 = vmax.f32 %v201, 0.0
    %208 = vrot.lane.b32.xlu0 %v203, 64
    %v209 = vpop.permute.xlu0 %208
    %v211 = vmax.f32 %v203, %v209
    %213 = vrot.lane.b32.xlu0 %v204, 64
    %v214 = vpop.permute.xlu0 %213
    %v216 = vmax.f32 %v204, %v214
    %v217 = vmax.f32 %v211, %v216
    %219 = vrot.lane.b32.xlu0 %v205, 64
    %v220 = vpop.permute.xlu0 %219
    %v222 = vmax.f32 %v205, %v220
    %224 = vrot.lane.b32.xlu0 %v206, 64
    %v225 = vpop.permute.xlu0 %224
    %v227 = vmax.f32 %v206, %v225
    %v228 = vmax.f32 %v222, %v227
    %v230 = vcombine.high %v217, %v217
    %v232 = vunpack.c.l.s4 1966171168
    %v233 = vunpack.c.0.s8 %v232
    %v234 = vlaneseq
    %v235 = vshrl.u32 %v234, 7
    %v236 = vsub.s32 %v233, %v235
    %v237 = vrot.slane %v217, %v236
    %v239 = vunpack.c.l.s4 1966171168
    %v240 = vunpack.c.0.s8 %v239
    %v241 = vlaneseq
    %v242 = vshrl.u32 %v241, 7
    %v243 = vsub.s32 %v240, %v242
    %v244 = vrot.slane %v230, %v243
    %v245 = vcombine.high %v237, %v237
    %v246 = vcombine.high %v244, %v244
    %v248 = vunpack.c.l.s4 1966171168
    %v249 = vunpack.c.0.s8 %v248
    %v250 = vlaneseq
    %v251 = vshrl.u32 %v250, 7
    %v252 = vsub.s32 %v249, %v251
    %v253 = vrot.slane %v237, %v252
    %v255 = vunpack.c.l.s4 1966171168
    %v256 = vunpack.c.0.s8 %v255
    %v257 = vlaneseq
    %v258 = vshrl.u32 %v257, 7
    %v259 = vsub.s32 %v256, %v258
    %v260 = vrot.slane %v244, %v259
    %v262 = vunpack.c.l.s4 1966171168
    %v263 = vunpack.c.0.s8 %v262
    %v264 = vlaneseq
    %v265 = vshrl.u32 %v264, 7
    %v266 = vsub.s32 %v263, %v265
    %v267 = vrot.slane %v245, %v266
    %v269 = vunpack.c.l.s4 1966171168
    %v270 = vunpack.c.0.s8 %v269
    %v271 = vlaneseq
    %v272 = vshrl.u32 %v271, 7
    %v273 = vsub.s32 %v270, %v272
    %v274 = vrot.slane %v246, %v273
    %v275 = vcombine.high %v253, %v253
    %v276 = vcombine.high %v260, %v260
    %v277 = vcombine.high %v267, %v267
    %v278 = vcombine.high %v274, %v274
    %v288 = vcombine.high %v228, %v228
    %v290 = vunpack.c.l.s4 1966171168
    %v291 = vunpack.c.0.s8 %v290
    %v292 = vlaneseq
    %v293 = vshrl.u32 %v292, 7
    %v294 = vsub.s32 %v291, %v293
    %v295 = vrot.slane %v228, %v294
    %v297 = vunpack.c.l.s4 1966171168
    %v298 = vunpack.c.0.s8 %v297
    %v299 = vlaneseq
    %v300 = vshrl.u32 %v299, 7
    %v301 = vsub.s32 %v298, %v300
    %v302 = vrot.slane %v288, %v301
    %v303 = vcombine.high %v295, %v295
    %v304 = vcombine.high %v302, %v302
    %v306 = vunpack.c.l.s4 1966171168
    %v307 = vunpack.c.0.s8 %v306
    %v308 = vlaneseq
    %v309 = vshrl.u32 %v308, 7
    %v310 = vsub.s32 %v307, %v309
    %v311 = vrot.slane %v295, %v310
    %v313 = vunpack.c.l.s4 1966171168
    %v314 = vunpack.c.0.s8 %v313
    %v315 = vlaneseq
    %v316 = vshrl.u32 %v315, 7
    %v317 = vsub.s32 %v314, %v316
    %v318 = vrot.slane %v302, %v317
    %v320 = vunpack.c.l.s4 1966171168
    %v321 = vunpack.c.0.s8 %v320
    %v322 = vlaneseq
    %v323 = vshrl.u32 %v322, 7
    %v324 = vsub.s32 %v321, %v323
    %v325 = vrot.slane %v303, %v324
    %v327 = vunpack.c.l.s4 1966171168
    %v328 = vunpack.c.0.s8 %v327
    %v329 = vlaneseq
    %v330 = vshrl.u32 %v329, 7
    %v331 = vsub.s32 %v328, %v330
    %v332 = vrot.slane %v304, %v331
    %v333 = vcombine.high %v311, %v311
    %v334 = vcombine.high %v318, %v318
    %v335 = vcombine.high %v325, %v325
    %v336 = vcombine.high %v332, %v332
    %v337 = vlaneseq
    %v338 = vshrl.u32 %v337, 7
    %v339 = vsub.s32 0, %v338
    %v340 = vrot.slane %v311, %v339
    %v341 = vlaneseq
    %v342 = vshrl.u32 %v341, 7
    %v343 = vsub.s32 0, %v342
    %v344 = vrot.slane %v325, %v343
    %v345 = vlaneseq
    %v346 = vshrl.u32 %v345, 7
    %v347 = vsub.s32 0, %v346
    %v348 = vrot.slane %v333, %v347
    %v349 = vlaneseq
    %v350 = vshrl.u32 %v349, 7
    %v351 = vsub.s32 0, %v350
    %v352 = vrot.slane %v335, %v351
    %v353 = vlaneseq
    %v354 = vshrl.u32 %v353, 7
    %v355 = vsub.s32 0, %v354
    %v356 = vrot.slane %v318, %v355
    %v357 = vlaneseq
    %v358 = vshrl.u32 %v357, 7
    %v359 = vsub.s32 0, %v358
    %v360 = vrot.slane %v332, %v359
    %v361 = vlaneseq
    %v362 = vshrl.u32 %v361, 7
    %v363 = vsub.s32 0, %v362
    %v364 = vrot.slane %v334, %v363
    %v365 = vlaneseq
    %v366 = vshrl.u32 %v365, 7
    %v367 = vsub.s32 0, %v366
    %v368 = vrot.slane %v336, %v367
    %vm377 = vcmask 1040384
    %v378 = vsel %vm377, %v253, %v340
    %v379 = vsel %vm377, %v267, %v344
    %v380 = vsel %vm377, %v275, %v348
    %v381 = vsel %vm377, %v277, %v352
    %v382 = vsel %vm377, %v260, %v356
    %v383 = vsel %vm377, %v274, %v360
    %v384 = vsel %vm377, %v276, %v364
    %v385 = vsel %vm377, %v278, %v368
    %v386 = vld [vmem:[%s2] sm:$0xff]
    %v387 = vld [vmem:[%s2 + $0x8] sm:$0xff]
    %v388 = vld [vmem:[%s2 + $0x10] sm:$0xff]
    %v389 = vld [vmem:[%s2 + $0x18] sm:$0xff]
    %v390 = vld [vmem:[%s2 + $0x20] sm:$0xff]
    %v391 = vld [vmem:[%s2 + $0x28] sm:$0xff]
    %v392 = vld [vmem:[%s2 + $0x30] sm:$0xff]
    %v393 = vld [vmem:[%s2 + $0x38] sm:$0xff]
    %v394 = vld [vmem:[%s2 + $0x40] sm:$0xff]
    %v395 = vld [vmem:[%s2 + $0x48] sm:$0xff]
    %v396 = vld [vmem:[%s2 + $0x50] sm:$0xff]
    %v397 = vld [vmem:[%s2 + $0x58] sm:$0xff]
    %v398 = vld [vmem:[%s2 + $0x60] sm:$0xff]
    %v399 = vld [vmem:[%s2 + $0x68] sm:$0xff]
    %v400 = vld [vmem:[%s2 + $0x70] sm:$0xff]
    %v401 = vld [vmem:[%s2 + $0x78] sm:$0xff]
    %v402 = vld [vmem:[%s2 + $0x80] sm:$0xff]
    %v403 = vld [vmem:[%s2 + $0x88] sm:$0xff]
    %v404 = vld [vmem:[%s2 + $0x90] sm:$0xff]
    %v405 = vld [vmem:[%s2 + $0x98] sm:$0xff]
    %v406 = vld [vmem:[%s2 + $0xa0] sm:$0xff]
    %v407 = vld [vmem:[%s2 + $0xa8] sm:$0xff]
    %v408 = vld [vmem:[%s2 + $0xb0] sm:$0xff]
    %v409 = vld [vmem:[%s2 + $0xb8] sm:$0xff]
    %v410 = vld [vmem:[%s2 + $0xc0] sm:$0xff]
    %v411 = vld [vmem:[%s2 + $0xc8] sm:$0xff]
    %v412 = vld [vmem:[%s2 + $0xd0] sm:$0xff]
    %v413 = vld [vmem:[%s2 + $0xd8] sm:$0xff]
    %v414 = vld [vmem:[%s2 + $0xe0] sm:$0xff]
    %v415 = vld [vmem:[%s2 + $0xe8] sm:$0xff]
    %v416 = vld [vmem:[%s2 + $0xf0] sm:$0xff]
    %v417 = vld [vmem:[%s2 + $0xf8] sm:$0xff]
    %v418 = vld [vmem:[%s2 + $0x100] sm:$0xff]
    %v419 = vld [vmem:[%s2 + $0x108] sm:$0xff]
    %v420 = vld [vmem:[%s2 + $0x110] sm:$0xff]
    %v421 = vld [vmem:[%s2 + $0x118] sm:$0xff]
    %v422 = vld [vmem:[%s2 + $0x120] sm:$0xff]
    %v423 = vld [vmem:[%s2 + $0x128] sm:$0xff]
    %v424 = vld [vmem:[%s2 + $0x130] sm:$0xff]
    %v425 = vld [vmem:[%s2 + $0x138] sm:$0xff]
    %v426 = vld [vmem:[%s2 + $0x140] sm:$0xff]
    %v427 = vld [vmem:[%s2 + $0x148] sm:$0xff]
    %v428 = vld [vmem:[%s2 + $0x150] sm:$0xff]
    %v429 = vld [vmem:[%s2 + $0x158] sm:$0xff]
    %v430 = vld [vmem:[%s2 + $0x160] sm:$0xff]
    %v431 = vld [vmem:[%s2 + $0x168] sm:$0xff]
    %v432 = vld [vmem:[%s2 + $0x170] sm:$0xff]
    %v433 = vld [vmem:[%s2 + $0x178] sm:$0xff]
    %v434 = vld [vmem:[%s2 + $0x180] sm:$0xff]
    %v435 = vld [vmem:[%s2 + $0x188] sm:$0xff]
    %v436 = vld [vmem:[%s2 + $0x190] sm:$0xff]
    %v437 = vld [vmem:[%s2 + $0x198] sm:$0xff]
    %v438 = vld [vmem:[%s2 + $0x1a0] sm:$0xff]
    %v439 = vld [vmem:[%s2 + $0x1a8] sm:$0xff]
    %v440 = vld [vmem:[%s2 + $0x1b0] sm:$0xff]
    %v441 = vld [vmem:[%s2 + $0x1b8] sm:$0xff]
    %v442 = vld [vmem:[%s2 + $0x1c0] sm:$0xff]
    %v443 = vld [vmem:[%s2 + $0x1c8] sm:$0xff]
    %v444 = vld [vmem:[%s2 + $0x1d0] sm:$0xff]
    %v445 = vld [vmem:[%s2 + $0x1d8] sm:$0xff]
    %v446 = vld [vmem:[%s2 + $0x1e0] sm:$0xff]
    %v447 = vld [vmem:[%s2 + $0x1e8] sm:$0xff]
    %v448 = vld [vmem:[%s2 + $0x1f0] sm:$0xff]
    %v449 = vld [vmem:[%s2 + $0x1f8] sm:$0xff]
    %vm450 = vcmask 523264
    %v452 = vsel %vm450, %v378, 0
    %454 = vmatprep.subr.mxu0 0.0
    %455 = vmatpush1.msra.mxu0 0.0
    %456 = vmatprep.subr.mxu0 0.0
    %457 = vmatpush1.msra.mxu0 0.0
    %458 = vmatprep.subr.mxu0 0.0
    %459 = vmatpush1.msra.mxu0 0.0
    %460 = vmatprep.subr.mxu0 0.0
    %461 = vmatpush1.msra.mxu0 0.0
    %462 = vmatprep.subr.mxu0 0.0
    %463 = vmatpush1.msra.mxu0 0.0
    %464 = vmatprep.subr.mxu0 0.0
    %465 = vmatpush1.msra.mxu0 0.0
    %466 = vmatprep.subr.mxu0 0.0
    %467 = vmatpush1.msra.mxu0 0.0
    %468 = vmatprep.subr.mxu0 0.0
    %469 = vmatpush1.msra.mxu0 0.0
    %470 = vmatprep.subr.mxu0 0.0
    %471 = vmatpush1.msra.mxu0 %v393
    %472 = vmatprep.subr.mxu0 0.0
    %473 = vmatpush1.msra.mxu0 %v392
    %474 = vmatprep.subr.mxu0 0.0
    %475 = vmatpush1.msra.mxu0 %v391
    %476 = vmatprep.subr.mxu0 0.0
    %477 = vmatpush1.msra.mxu0 %v390
    %478 = vmatprep.subr.mxu0 0.0
    %479 = vmatpush1.msra.mxu0 %v389
    %480 = vmatprep.subr.mxu0 0.0
    %481 = vmatpush1.msra.mxu0 %v388
    %482 = vmatprep.subr.mxu0 0.0
    %483 = vmatpush1.msra.mxu0 %v387
    %484 = vmatprep.subr.mxu0 0.0
    %485 = vmatpush1.msra.mxu0 %v386
    %486 = vmatprep.subr.mxu0 0.0
    %487 = vmatpush2.msra.mxu0 0.0
    %488 = vmatprep.subr.mxu0 0.0
    %489 = vmatpush2.msra.mxu0 0.0
    %490 = vmatprep.subr.mxu0 0.0
    %491 = vmatpush2.msra.mxu0 0.0
    %492 = vmatprep.subr.mxu0 0.0
    %493 = vmatpush2.msra.mxu0 0.0
    %494 = vmatprep.subr.mxu0 0.0
    %495 = vmatpush2.msra.mxu0 0.0
    %496 = vmatprep.subr.mxu0 0.0
    %497 = vmatpush2.msra.mxu0 0.0
    %498 = vmatprep.subr.mxu0 0.0
    %499 = vmatpush2.msra.mxu0 0.0
    %500 = vmatprep.subr.mxu0 0.0
    %501 = vmatpush2.msra.mxu0 0.0
    %502 = vmatprep.subr.mxu0 0.0
    %503 = vmatpush2.msra.mxu0 0.0
    %504 = vmatprep.subr.mxu0 0.0
    %505 = vmatpush2.msra.mxu0 0.0
    %506 = vmatprep.subr.mxu0 0.0
    %507 = vmatpush2.msra.mxu0 0.0
    %508 = vmatprep.subr.mxu0 0.0
    %509 = vmatpush2.msra.mxu0 0.0
    %510 = vmatprep.subr.mxu0 0.0
    %511 = vmatpush2.msra.mxu0 0.0
    %512 = vmatprep.subr.mxu0 0.0
    %513 = vmatpush2.msra.mxu0 0.0
    %514 = vmatprep.subr.mxu0 0.0
    %515 = vmatpush2.msra.mxu0 0.0
    %516 = vmatprep.subr.mxu0 0.0
    %517 = vmatpush2.msra.mxu0 0.0
    %518 = vmatprep.mubr.f32.mxu0 0.0
    %519 = vmatmul.mubr.f32.gmra.mxu0 %v452
    %v520 = vpop.f32.mrf.mxu0
    %v521 = vadd.f32 0.0, %v520
    %v522 = vpop.f32.mrf.mxu0
    %523 = vdwg.mxu0
    %v525 = vsel %vm450, %v379, 0
    %527 = vmatprep.subr.mxu0 0.0
    %528 = vmatpush1.msra.mxu0 0.0
    %529 = vmatprep.subr.mxu0 0.0
    %530 = vmatpush1.msra.mxu0 0.0
    %531 = vmatprep.subr.mxu0 0.0
    %532 = vmatpush1.msra.mxu0 0.0
    %533 = vmatprep.subr.mxu0 0.0
    %534 = vmatpush1.msra.mxu0 0.0
    %535 = vmatprep.subr.mxu0 0.0
    %536 = vmatpush1.msra.mxu0 0.0
    %537 = vmatprep.subr.mxu0 0.0
    %538 = vmatpush1.msra.mxu0 0.0
    %539 = vmatprep.subr.mxu0 0.0
    %540 = vmatpush1.msra.mxu0 0.0
    %541 = vmatprep.subr.mxu0 0.0
    %542 = vmatpush1.msra.mxu0 0.0
    %543 = vmatprep.subr.mxu0 0.0
    %544 = vmatpush1.msra.mxu0 %v401
    %545 = vmatprep.subr.mxu0 0.0
    %546 = vmatpush1.msra.mxu0 %v400
    %547 = vmatprep.subr.mxu0 0.0
    %548 = vmatpush1.msra.mxu0 %v399
    %549 = vmatprep.subr.mxu0 0.0
    %550 = vmatpush1.msra.mxu0 %v398
    %551 = vmatprep.subr.mxu0 0.0
    %552 = vmatpush1.msra.mxu0 %v397
    %553 = vmatprep.subr.mxu0 0.0
    %554 = vmatpush1.msra.mxu0 %v396
    %555 = vmatprep.subr.mxu0 0.0
    %556 = vmatpush1.msra.mxu0 %v395
    %557 = vmatprep.subr.mxu0 0.0
    %558 = vmatpush1.msra.mxu0 %v394
    %559 = vmatprep.subr.mxu0 0.0
    %560 = vmatpush2.msra.mxu0 0.0
    %561 = vmatprep.subr.mxu0 0.0
    %562 = vmatpush2.msra.mxu0 0.0
    %563 = vmatprep.subr.mxu0 0.0
    %564 = vmatpush2.msra.mxu0 0.0
    %565 = vmatprep.subr.mxu0 0.0
    %566 = vmatpush2.msra.mxu0 0.0
    %567 = vmatprep.subr.mxu0 0.0
    %568 = vmatpush2.msra.mxu0 0.0
    %569 = vmatprep.subr.mxu0 0.0
    %570 = vmatpush2.msra.mxu0 0.0
    %571 = vmatprep.subr.mxu0 0.0
    %572 = vmatpush2.msra.mxu0 0.0
    %573 = vmatprep.subr.mxu0 0.0
    %574 = vmatpush2.msra.mxu0 0.0
    %575 = vmatprep.subr.mxu0 0.0
    %576 = vmatpush2.msra.mxu0 0.0
    %577 = vmatprep.subr.mxu0 0.0
    %578 = vmatpush2.msra.mxu0 0.0
    %579 = vmatprep.subr.mxu0 0.0
    %580 = vmatpush2.msra.mxu0 0.0
    %581 = vmatprep.subr.mxu0 0.0
    %582 = vmatpush2.msra.mxu0 0.0
    %583 = vmatprep.subr.mxu0 0.0
    %584 = vmatpush2.msra.mxu0 0.0
    %585 = vmatprep.subr.mxu0 0.0
    %586 = vmatpush2.msra.mxu0 0.0
    %587 = vmatprep.subr.mxu0 0.0
    %588 = vmatpush2.msra.mxu0 0.0
    %589 = vmatprep.subr.mxu0 0.0
    %590 = vmatpush2.msra.mxu0 0.0
    %591 = vmatprep.mubr.f32.mxu0 0.0
    %592 = vmatmul.mubr.f32.gmra.mxu0 %v525
    %v593 = vpop.f32.mrf.mxu0
    %v594 = vadd.f32 0.0, %v593
    %v595 = vpop.f32.mrf.mxu0
    %596 = vdwg.mxu0
    %v598 = vsel %vm450, %v380, 0
    %600 = vmatprep.subr.mxu0 0.0
    %601 = vmatpush1.msra.mxu0 0.0
    %602 = vmatprep.subr.mxu0 0.0
    %603 = vmatpush1.msra.mxu0 0.0
    %604 = vmatprep.subr.mxu0 0.0
    %605 = vmatpush1.msra.mxu0 0.0
    %606 = vmatprep.subr.mxu0 0.0
    %607 = vmatpush1.msra.mxu0 0.0
    %608 = vmatprep.subr.mxu0 0.0
    %609 = vmatpush1.msra.mxu0 0.0
    %610 = vmatprep.subr.mxu0 0.0
    %611 = vmatpush1.msra.mxu0 0.0
    %612 = vmatprep.subr.mxu0 0.0
    %613 = vmatpush1.msra.mxu0 0.0
    %614 = vmatprep.subr.mxu0 0.0
    %615 = vmatpush1.msra.mxu0 0.0
    %616 = vmatprep.subr.mxu0 0.0
    %617 = vmatpush1.msra.mxu0 %v409
    %618 = vmatprep.subr.mxu0 0.0
    %619 = vmatpush1.msra.mxu0 %v408
    %620 = vmatprep.subr.mxu0 0.0
    %621 = vmatpush1.msra.mxu0 %v407
    %622 = vmatprep.subr.mxu0 0.0
    %623 = vmatpush1.msra.mxu0 %v406
    %624 = vmatprep.subr.mxu0 0.0
    %625 = vmatpush1.msra.mxu0 %v405
    %626 = vmatprep.subr.mxu0 0.0
    %627 = vmatpush1.msra.mxu0 %v404
    %628 = vmatprep.subr.mxu0 0.0
    %629 = vmatpush1.msra.mxu0 %v403
    %630 = vmatprep.subr.mxu0 0.0
    %631 = vmatpush1.msra.mxu0 %v402
    %632 = vmatprep.subr.mxu0 0.0
    %633 = vmatpush2.msra.mxu0 0.0
    %634 = vmatprep.subr.mxu0 0.0
    %635 = vmatpush2.msra.mxu0 0.0
    %636 = vmatprep.subr.mxu0 0.0
    %637 = vmatpush2.msra.mxu0 0.0
    %638 = vmatprep.subr.mxu0 0.0
    %639 = vmatpush2.msra.mxu0 0.0
    %640 = vmatprep.subr.mxu0 0.0
    %641 = vmatpush2.msra.mxu0 0.0
    %642 = vmatprep.subr.mxu0 0.0
    %643 = vmatpush2.msra.mxu0 0.0
    %644 = vmatprep.subr.mxu0 0.0
    %645 = vmatpush2.msra.mxu0 0.0
    %646 = vmatprep.subr.mxu0 0.0
    %647 = vmatpush2.msra.mxu0 0.0
    %648 = vmatprep.subr.mxu0 0.0
    %649 = vmatpush2.msra.mxu0 0.0
    %650 = vmatprep.subr.mxu0 0.0
    %651 = vmatpush2.msra.mxu0 0.0
    %652 = vmatprep.subr.mxu0 0.0
    %653 = vmatpush2.msra.mxu0 0.0
    %654 = vmatprep.subr.mxu0 0.0
    %655 = vmatpush2.msra.mxu0 0.0
    %656 = vmatprep.subr.mxu0 0.0
    %657 = vmatpush2.msra.mxu0 0.0
    %658 = vmatprep.subr.mxu0 0.0
    %659 = vmatpush2.msra.mxu0 0.0
    %660 = vmatprep.subr.mxu0 0.0
    %661 = vmatpush2.msra.mxu0 0.0
    %662 = vmatprep.subr.mxu0 0.0
    %663 = vmatpush2.msra.mxu0 0.0
    %664 = vmatprep.mubr.f32.mxu0 0.0
    %665 = vmatmul.mubr.f32.gmra.mxu0 %v598
    %v666 = vpop.f32.mrf.mxu0
    %v667 = vadd.f32 0.0, %v666
    %v668 = vpop.f32.mrf.mxu0
    %669 = vdwg.mxu0
    %v671 = vsel %vm450, %v381, 0
    %673 = vmatprep.subr.mxu0 0.0
    %674 = vmatpush1.msra.mxu0 0.0
    %675 = vmatprep.subr.mxu0 0.0
    %676 = vmatpush1.msra.mxu0 0.0
    %677 = vmatprep.subr.mxu0 0.0
    %678 = vmatpush1.msra.mxu0 0.0
    %679 = vmatprep.subr.mxu0 0.0
    %680 = vmatpush1.msra.mxu0 0.0
    %681 = vmatprep.subr.mxu0 0.0
    %682 = vmatpush1.msra.mxu0 0.0
    %683 = vmatprep.subr.mxu0 0.0
    %684 = vmatpush1.msra.mxu0 0.0
    %685 = vmatprep.subr.mxu0 0.0
    %686 = vmatpush1.msra.mxu0 0.0
    %687 = vmatprep.subr.mxu0 0.0
    %688 = vmatpush1.msra.mxu0 0.0
    %689 = vmatprep.subr.mxu0 0.0
    %690 = vmatpush1.msra.mxu0 %v417
    %691 = vmatprep.subr.mxu0 0.0
    %692 = vmatpush1.msra.mxu0 %v416
    %693 = vmatprep.subr.mxu0 0.0
    %694 = vmatpush1.msra.mxu0 %v415
    %695 = vmatprep.subr.mxu0 0.0
    %696 = vmatpush1.msra.mxu0 %v414
    %697 = vmatprep.subr.mxu0 0.0
    %698 = vmatpush1.msra.mxu0 %v413
    %699 = vmatprep.subr.mxu0 0.0
    %700 = vmatpush1.msra.mxu0 %v412
    %701 = vmatprep.subr.mxu0 0.0
    %702 = vmatpush1.msra.mxu0 %v411
    %703 = vmatprep.subr.mxu0 0.0
    %704 = vmatpush1.msra.mxu0 %v410
    %705 = vmatprep.subr.mxu0 0.0
    %706 = vmatpush2.msra.mxu0 0.0
    %707 = vmatprep.subr.mxu0 0.0
    %708 = vmatpush2.msra.mxu0 0.0
    %709 = vmatprep.subr.mxu0 0.0
    %710 = vmatpush2.msra.mxu0 0.0
    %711 = vmatprep.subr.mxu0 0.0
    %712 = vmatpush2.msra.mxu0 0.0
    %713 = vmatprep.subr.mxu0 0.0
    %714 = vmatpush2.msra.mxu0 0.0
    %715 = vmatprep.subr.mxu0 0.0
    %716 = vmatpush2.msra.mxu0 0.0
    %717 = vmatprep.subr.mxu0 0.0
    %718 = vmatpush2.msra.mxu0 0.0
    %719 = vmatprep.subr.mxu0 0.0
    %720 = vmatpush2.msra.mxu0 0.0
    %721 = vmatprep.subr.mxu0 0.0
    %722 = vmatpush2.msra.mxu0 0.0
    %723 = vmatprep.subr.mxu0 0.0
    %724 = vmatpush2.msra.mxu0 0.0
    %725 = vmatprep.subr.mxu0 0.0
    %726 = vmatpush2.msra.mxu0 0.0
    %727 = vmatprep.subr.mxu0 0.0
    %728 = vmatpush2.msra.mxu0 0.0
    %729 = vmatprep.subr.mxu0 0.0
    %730 = vmatpush2.msra.mxu0 0.0
    %731 = vmatprep.subr.mxu0 0.0
    %732 = vmatpush2.msra.mxu0 0.0
    %733 = vmatprep.subr.mxu0 0.0
    %734 = vmatpush2.msra.mxu0 0.0
    %735 = vmatprep.subr.mxu0 0.0
    %736 = vmatpush2.msra.mxu0 0.0
    %737 = vmatprep.mubr.f32.mxu0 0.0
    %738 = vmatmul.mubr.f32.gmra.mxu0 %v671
    %v739 = vpop.f32.mrf.mxu0
    %v740 = vadd.f32 0.0, %v739
    %v741 = vpop.f32.mrf.mxu0
    %742 = vdwg.mxu0
    %v744 = vsel %vm450, %v382, 0
    %746 = vmatprep.subr.mxu0 0.0
    %747 = vmatpush1.msra.mxu0 0.0
    %748 = vmatprep.subr.mxu0 0.0
    %749 = vmatpush1.msra.mxu0 0.0
    %750 = vmatprep.subr.mxu0 0.0
    %751 = vmatpush1.msra.mxu0 0.0
    %752 = vmatprep.subr.mxu0 0.0
    %753 = vmatpush1.msra.mxu0 0.0
    %754 = vmatprep.subr.mxu0 0.0
    %755 = vmatpush1.msra.mxu0 0.0
    %756 = vmatprep.subr.mxu0 0.0
    %757 = vmatpush1.msra.mxu0 0.0
    %758 = vmatprep.subr.mxu0 0.0
    %759 = vmatpush1.msra.mxu0 0.0
    %760 = vmatprep.subr.mxu0 0.0
    %761 = vmatpush1.msra.mxu0 0.0
    %762 = vmatprep.subr.mxu0 0.0
    %763 = vmatpush1.msra.mxu0 %v425
    %764 = vmatprep.subr.mxu0 0.0
    %765 = vmatpush1.msra.mxu0 %v424
    %766 = vmatprep.subr.mxu0 0.0
    %767 = vmatpush1.msra.mxu0 %v423
    %768 = vmatprep.subr.mxu0 0.0
    %769 = vmatpush1.msra.mxu0 %v422
    %770 = vmatprep.subr.mxu0 0.0
    %771 = vmatpush1.msra.mxu0 %v421
    %772 = vmatprep.subr.mxu0 0.0
    %773 = vmatpush1.msra.mxu0 %v420
    %774 = vmatprep.subr.mxu0 0.0
    %775 = vmatpush1.msra.mxu0 %v419
    %776 = vmatprep.subr.mxu0 0.0
    %777 = vmatpush1.msra.mxu0 %v418
    %778 = vmatprep.subr.mxu0 0.0
    %779 = vmatpush2.msra.mxu0 0.0
    %780 = vmatprep.subr.mxu0 0.0
    %781 = vmatpush2.msra.mxu0 0.0
    %782 = vmatprep.subr.mxu0 0.0
    %783 = vmatpush2.msra.mxu0 0.0
    %784 = vmatprep.subr.mxu0 0.0
    %785 = vmatpush2.msra.mxu0 0.0
    %786 = vmatprep.subr.mxu0 0.0
    %787 = vmatpush2.msra.mxu0 0.0
    %788 = vmatprep.subr.mxu0 0.0
    %789 = vmatpush2.msra.mxu0 0.0
    %790 = vmatprep.subr.mxu0 0.0
    %791 = vmatpush2.msra.mxu0 0.0
    %792 = vmatprep.subr.mxu0 0.0
    %793 = vmatpush2.msra.mxu0 0.0
    %794 = vmatprep.subr.mxu0 0.0
    %795 = vmatpush2.msra.mxu0 0.0
    %796 = vmatprep.subr.mxu0 0.0
    %797 = vmatpush2.msra.mxu0 0.0
    %798 = vmatprep.subr.mxu0 0.0
    %799 = vmatpush2.msra.mxu0 0.0
    %800 = vmatprep.subr.mxu0 0.0
    %801 = vmatpush2.msra.mxu0 0.0
    %802 = vmatprep.subr.mxu0 0.0
    %803 = vmatpush2.msra.mxu0 0.0
    %804 = vmatprep.subr.mxu0 0.0
    %805 = vmatpush2.msra.mxu0 0.0
    %806 = vmatprep.subr.mxu0 0.0
    %807 = vmatpush2.msra.mxu0 0.0
    %808 = vmatprep.subr.mxu0 0.0
    %809 = vmatpush2.msra.mxu0 0.0
    %810 = vmatprep.mubr.f32.mxu0 0.0
    %811 = vmatmul.mubr.f32.gmra.mxu0 %v744
    %v812 = vpop.f32.mrf.mxu0
    %v813 = vadd.f32 0.0, %v812
    %v814 = vpop.f32.mrf.mxu0
    %815 = vdwg.mxu0
    %v817 = vsel %vm450, %v383, 0
    %819 = vmatprep.subr.mxu0 0.0
    %820 = vmatpush1.msra.mxu0 0.0
    %821 = vmatprep.subr.mxu0 0.0
    %822 = vmatpush1.msra.mxu0 0.0
    %823 = vmatprep.subr.mxu0 0.0
    %824 = vmatpush1.msra.mxu0 0.0
    %825 = vmatprep.subr.mxu0 0.0
    %826 = vmatpush1.msra.mxu0 0.0
    %827 = vmatprep.subr.mxu0 0.0
    %828 = vmatpush1.msra.mxu0 0.0
    %829 = vmatprep.subr.mxu0 0.0
    %830 = vmatpush1.msra.mxu0 0.0
    %831 = vmatprep.subr.mxu0 0.0
    %832 = vmatpush1.msra.mxu0 0.0
    %833 = vmatprep.subr.mxu0 0.0
    %834 = vmatpush1.msra.mxu0 0.0
    %835 = vmatprep.subr.mxu0 0.0
    %836 = vmatpush1.msra.mxu0 %v433
    %837 = vmatprep.subr.mxu0 0.0
    %838 = vmatpush1.msra.mxu0 %v432
    %839 = vmatprep.subr.mxu0 0.0
    %840 = vmatpush1.msra.mxu0 %v431
    %841 = vmatprep.subr.mxu0 0.0
    %842 = vmatpush1.msra.mxu0 %v430
    %843 = vmatprep.subr.mxu0 0.0
    %844 = vmatpush1.msra.mxu0 %v429
    %845 = vmatprep.subr.mxu0 0.0
    %846 = vmatpush1.msra.mxu0 %v428
    %847 = vmatprep.subr.mxu0 0.0
    %848 = vmatpush1.msra.mxu0 %v427
    %849 = vmatprep.subr.mxu0 0.0
    %850 = vmatpush1.msra.mxu0 %v426
    %851 = vmatprep.subr.mxu0 0.0
    %852 = vmatpush2.msra.mxu0 0.0
    %853 = vmatprep.subr.mxu0 0.0
    %854 = vmatpush2.msra.mxu0 0.0
    %855 = vmatprep.subr.mxu0 0.0
    %856 = vmatpush2.msra.mxu0 0.0
    %857 = vmatprep.subr.mxu0 0.0
    %858 = vmatpush2.msra.mxu0 0.0
    %859 = vmatprep.subr.mxu0 0.0
    %860 = vmatpush2.msra.mxu0 0.0
    %861 = vmatprep.subr.mxu0 0.0
    %862 = vmatpush2.msra.mxu0 0.0
    %863 = vmatprep.subr.mxu0 0.0
    %864 = vmatpush2.msra.mxu0 0.0
    %865 = vmatprep.subr.mxu0 0.0
    %866 = vmatpush2.msra.mxu0 0.0
    %867 = vmatprep.subr.mxu0 0.0
    %868 = vmatpush2.msra.mxu0 0.0
    %869 = vmatprep.subr.mxu0 0.0
    %870 = vmatpush2.msra.mxu0 0.0
    %871 = vmatprep.subr.mxu0 0.0
    %872 = vmatpush2.msra.mxu0 0.0
    %873 = vmatprep.subr.mxu0 0.0
    %874 = vmatpush2.msra.mxu0 0.0
    %875 = vmatprep.subr.mxu0 0.0
    %876 = vmatpush2.msra.mxu0 0.0
    %877 = vmatprep.subr.mxu0 0.0
    %878 = vmatpush2.msra.mxu0 0.0
    %879 = vmatprep.subr.mxu0 0.0
    %880 = vmatpush2.msra.mxu0 0.0
    %881 = vmatprep.subr.mxu0 0.0
    %882 = vmatpush2.msra.mxu0 0.0
    %883 = vmatprep.mubr.f32.mxu0 0.0
    %884 = vmatmul.mubr.f32.gmra.mxu0 %v817
    %v885 = vpop.f32.mrf.mxu0
    %v886 = vadd.f32 0.0, %v885
    %v887 = vpop.f32.mrf.mxu0
    %888 = vdwg.mxu0
    %v890 = vsel %vm450, %v384, 0
    %892 = vmatprep.subr.mxu0 0.0
    %893 = vmatpush1.msra.mxu0 0.0
    %894 = vmatprep.subr.mxu0 0.0
    %895 = vmatpush1.msra.mxu0 0.0
    %896 = vmatprep.subr.mxu0 0.0
    %897 = vmatpush1.msra.mxu0 0.0
    %898 = vmatprep.subr.mxu0 0.0
    %899 = vmatpush1.msra.mxu0 0.0
    %900 = vmatprep.subr.mxu0 0.0
    %901 = vmatpush1.msra.mxu0 0.0
    %902 = vmatprep.subr.mxu0 0.0
    %903 = vmatpush1.msra.mxu0 0.0
    %904 = vmatprep.subr.mxu0 0.0
    %905 = vmatpush1.msra.mxu0 0.0
    %906 = vmatprep.subr.mxu0 0.0
    %907 = vmatpush1.msra.mxu0 0.0
    %908 = vmatprep.subr.mxu0 0.0
    %909 = vmatpush1.msra.mxu0 %v441
    %910 = vmatprep.subr.mxu0 0.0
    %911 = vmatpush1.msra.mxu0 %v440
    %912 = vmatprep.subr.mxu0 0.0
    %913 = vmatpush1.msra.mxu0 %v439
    %914 = vmatprep.subr.mxu0 0.0
    %915 = vmatpush1.msra.mxu0 %v438
    %916 = vmatprep.subr.mxu0 0.0
    %917 = vmatpush1.msra.mxu0 %v437
    %918 = vmatprep.subr.mxu0 0.0
    %919 = vmatpush1.msra.mxu0 %v436
    %920 = vmatprep.subr.mxu0 0.0
    %921 = vmatpush1.msra.mxu0 %v435
    %922 = vmatprep.subr.mxu0 0.0
    %923 = vmatpush1.msra.mxu0 %v434
    %924 = vmatprep.subr.mxu0 0.0
    %925 = vmatpush2.msra.mxu0 0.0
    %926 = vmatprep.subr.mxu0 0.0
    %927 = vmatpush2.msra.mxu0 0.0
    %928 = vmatprep.subr.mxu0 0.0
    %929 = vmatpush2.msra.mxu0 0.0
    %930 = vmatprep.subr.mxu0 0.0
    %931 = vmatpush2.msra.mxu0 0.0
    %932 = vmatprep.subr.mxu0 0.0
    %933 = vmatpush2.msra.mxu0 0.0
    %934 = vmatprep.subr.mxu0 0.0
    %935 = vmatpush2.msra.mxu0 0.0
    %936 = vmatprep.subr.mxu0 0.0
    %937 = vmatpush2.msra.mxu0 0.0
    %938 = vmatprep.subr.mxu0 0.0
    %939 = vmatpush2.msra.mxu0 0.0
    %940 = vmatprep.subr.mxu0 0.0
    %941 = vmatpush2.msra.mxu0 0.0
    %942 = vmatprep.subr.mxu0 0.0
    %943 = vmatpush2.msra.mxu0 0.0
    %944 = vmatprep.subr.mxu0 0.0
    %945 = vmatpush2.msra.mxu0 0.0
    %946 = vmatprep.subr.mxu0 0.0
    %947 = vmatpush2.msra.mxu0 0.0
    %948 = vmatprep.subr.mxu0 0.0
    %949 = vmatpush2.msra.mxu0 0.0
    %950 = vmatprep.subr.mxu0 0.0
    %951 = vmatpush2.msra.mxu0 0.0
    %952 = vmatprep.subr.mxu0 0.0
    %953 = vmatpush2.msra.mxu0 0.0
    %954 = vmatprep.subr.mxu0 0.0
    %955 = vmatpush2.msra.mxu0 0.0
    %956 = vmatprep.mubr.f32.mxu0 0.0
    %957 = vmatmul.mubr.f32.gmra.mxu0 %v890
    %v958 = vpop.f32.mrf.mxu0
    %v959 = vadd.f32 0.0, %v958
    %v960 = vpop.f32.mrf.mxu0
    %961 = vdwg.mxu0
    %v963 = vsel %vm450, %v385, 0
    %965 = vmatprep.subr.mxu0 0.0
    %966 = vmatpush1.msra.mxu0 0.0
    %967 = vmatprep.subr.mxu0 0.0
    %968 = vmatpush1.msra.mxu0 0.0
    %969 = vmatprep.subr.mxu0 0.0
    %970 = vmatpush1.msra.mxu0 0.0
    %971 = vmatprep.subr.mxu0 0.0
    %972 = vmatpush1.msra.mxu0 0.0
    %973 = vmatprep.subr.mxu0 0.0
    %974 = vmatpush1.msra.mxu0 0.0
    %975 = vmatprep.subr.mxu0 0.0
    %976 = vmatpush1.msra.mxu0 0.0
    %977 = vmatprep.subr.mxu0 0.0
    %978 = vmatpush1.msra.mxu0 0.0
    %979 = vmatprep.subr.mxu0 0.0
    %980 = vmatpush1.msra.mxu0 0.0
    %981 = vmatprep.subr.mxu0 0.0
    %982 = vmatpush1.msra.mxu0 %v449
    %983 = vmatprep.subr.mxu0 0.0
    %984 = vmatpush1.msra.mxu0 %v448
    %985 = vmatprep.subr.mxu0 0.0
    %986 = vmatpush1.msra.mxu0 %v447
    %987 = vmatprep.subr.mxu0 0.0
    %988 = vmatpush1.msra.mxu0 %v446
    %989 = vmatprep.subr.mxu0 0.0
    %990 = vmatpush1.msra.mxu0 %v445
    %991 = vmatprep.subr.mxu0 0.0
    %992 = vmatpush1.msra.mxu0 %v444
    %993 = vmatprep.subr.mxu0 0.0
    %994 = vmatpush1.msra.mxu0 %v443
    %995 = vmatprep.subr.mxu0 0.0
    %996 = vmatpush1.msra.mxu0 %v442
    %997 = vmatprep.subr.mxu0 0.0
    %998 = vmatpush2.msra.mxu0 0.0
    %999 = vmatprep.subr.mxu0 0.0
    %1000 = vmatpush2.msra.mxu0 0.0
    %1001 = vmatprep.subr.mxu0 0.0
    %1002 = vmatpush2.msra.mxu0 0.0
    %1003 = vmatprep.subr.mxu0 0.0
    %1004 = vmatpush2.msra.mxu0 0.0
    %1005 = vmatprep.subr.mxu0 0.0
    %1006 = vmatpush2.msra.mxu0 0.0
    %1007 = vmatprep.subr.mxu0 0.0
    %1008 = vmatpush2.msra.mxu0 0.0
    %1009 = vmatprep.subr.mxu0 0.0
    %1010 = vmatpush2.msra.mxu0 0.0
    %1011 = vmatprep.subr.mxu0 0.0
    %1012 = vmatpush2.msra.mxu0 0.0
    %1013 = vmatprep.subr.mxu0 0.0
    %1014 = vmatpush2.msra.mxu0 0.0
    %1015 = vmatprep.subr.mxu0 0.0
    %1016 = vmatpush2.msra.mxu0 0.0
    %1017 = vmatprep.subr.mxu0 0.0
    %1018 = vmatpush2.msra.mxu0 0.0
    %1019 = vmatprep.subr.mxu0 0.0
    %1020 = vmatpush2.msra.mxu0 0.0
    %1021 = vmatprep.subr.mxu0 0.0
    %1022 = vmatpush2.msra.mxu0 0.0
    %1023 = vmatprep.subr.mxu0 0.0
    %1024 = vmatpush2.msra.mxu0 0.0
    %1025 = vmatprep.subr.mxu0 0.0
    %1026 = vmatpush2.msra.mxu0 0.0
    %1027 = vmatprep.subr.mxu0 0.0
    %1028 = vmatpush2.msra.mxu0 0.0
    %1029 = vmatprep.mubr.f32.mxu0 0.0
    %1030 = vmatmul.mubr.f32.gmra.mxu0 %v963
    %v1031 = vpop.f32.mrf.mxu0
    %v1032 = vadd.f32 0.0, %v1031
    %v1033 = vpop.f32.mrf.mxu0
    %1034 = vdwg.mxu0
    %vm1035 = vcmask 254976
    %v1036 = vsel %vm1035, %v521, 0.0
    %v1037 = vsel %vm1035, %v594, 0.0
    %v1038 = vadd.f32 %v1036, %v1037
    %v1039 = vsel %vm1035, %v667, 0.0
    %v1040 = vadd.f32 %v1038, %v1039
    %v1041 = vsel %vm1035, %v740, 0.0
    %v1042 = vadd.f32 %v1040, %v1041
    %v1043 = vsel %vm1035, %v813, 0.0
    %v1044 = vadd.f32 %v1042, %v1043
    %v1045 = vsel %vm1035, %v886, 0.0
    %v1046 = vadd.f32 %v1044, %v1045
    %v1047 = vsel %vm1035, %v959, 0.0
    %v1048 = vadd.f32 %v1046, %v1047
    %v1049 = vsel %vm1035, %v1032, 0.0
    %v1050 = vadd.f32 %v1048, %v1049
    %v1051 = vlaneseq
    %v1052 = vshrl.u32 %v1051, 7
    %v1053 = vsub.s32 0, %v1052
    %v1054 = vrot.slane %v26, %v1053
    %v1055 = vadd.f32 %v1050, %v1054
    %v1056 = vlaneseq
    %v1057 = vshrl.u32 %v1056, 7
    %v1058 = vsub.s32 1, %v1057
    %v1059 = vrot.slane %v26, %v1058
    %vm1060 = vcmask 261120
    %v1062 = vsel %vm1060, %v1055, 0
    %1064 = vmatprep.subr.mxu0 0.0
    %1065 = vmatpush1.msra.mxu0 0.0
    %1066 = vmatprep.subr.mxu0 0.0
    %1067 = vmatpush1.msra.mxu0 0.0
    %1068 = vmatprep.subr.mxu0 0.0
    %1069 = vmatpush1.msra.mxu0 0.0
    %1070 = vmatprep.subr.mxu0 0.0
    %1071 = vmatpush1.msra.mxu0 0.0
    %1072 = vmatprep.subr.mxu0 0.0
    %1073 = vmatpush1.msra.mxu0 0.0
    %1074 = vmatprep.subr.mxu0 0.0
    %1075 = vmatpush1.msra.mxu0 0.0
    %1076 = vmatprep.subr.mxu0 0.0
    %1077 = vmatpush1.msra.mxu0 0.0
    %1078 = vmatprep.subr.mxu0 0.0
    %1079 = vmatpush1.msra.mxu0 0.0
    %1080 = vmatprep.subr.mxu0 0.0
    %1081 = vmatpush1.msra.mxu0 0.0
    %1082 = vmatprep.subr.mxu0 0.0
    %1083 = vmatpush1.msra.mxu0 0.0
    %1084 = vmatprep.subr.mxu0 0.0
    %1085 = vmatpush1.msra.mxu0 0.0
    %1086 = vmatprep.subr.mxu0 0.0
    %1087 = vmatpush1.msra.mxu0 0.0
    %1088 = vmatprep.subr.mxu0 0.0
    %1089 = vmatpush1.msra.mxu0 %v21
    %1090 = vmatprep.subr.mxu0 0.0
    %1091 = vmatpush1.msra.mxu0 %v20
    %1092 = vmatprep.subr.mxu0 0.0
    %1093 = vmatpush1.msra.mxu0 %v19
    %1094 = vmatprep.subr.mxu0 0.0
    %1095 = vmatpush1.msra.mxu0 %v18
    %1096 = vmatprep.subr.mxu0 0.0
    %1097 = vmatpush2.msra.mxu0 0.0
    %1098 = vmatprep.subr.mxu0 0.0
    %1099 = vmatpush2.msra.mxu0 0.0
    %1100 = vmatprep.subr.mxu0 0.0
    %1101 = vmatpush2.msra.mxu0 0.0
    %1102 = vmatprep.subr.mxu0 0.0
    %1103 = vmatpush2.msra.mxu0 0.0
    %1104 = vmatprep.subr.mxu0 0.0
    %1105 = vmatpush2.msra.mxu0 0.0
    %1106 = vmatprep.subr.mxu0 0.0
    %1107 = vmatpush2.msra.mxu0 0.0
    %1108 = vmatprep.subr.mxu0 0.0
    %1109 = vmatpush2.msra.mxu0 0.0
    %1110 = vmatprep.subr.mxu0 0.0
    %1111 = vmatpush2.msra.mxu0 0.0
    %1112 = vmatprep.subr.mxu0 0.0
    %1113 = vmatpush2.msra.mxu0 0.0
    %1114 = vmatprep.subr.mxu0 0.0
    %1115 = vmatpush2.msra.mxu0 0.0
    %1116 = vmatprep.subr.mxu0 0.0
    %1117 = vmatpush2.msra.mxu0 0.0
    %1118 = vmatprep.subr.mxu0 0.0
    %1119 = vmatpush2.msra.mxu0 0.0
    %1120 = vmatprep.subr.mxu0 0.0
    %1121 = vmatpush2.msra.mxu0 0.0
    %1122 = vmatprep.subr.mxu0 0.0
    %1123 = vmatpush2.msra.mxu0 0.0
    %1124 = vmatprep.subr.mxu0 0.0
    %1125 = vmatpush2.msra.mxu0 0.0
    %1126 = vmatprep.subr.mxu0 0.0
    %1127 = vmatpush2.msra.mxu0 0.0
    %1128 = vmatprep.mubr.f32.mxu0 0.0
    %1129 = vmatmul.mubr.f32.gmra.mxu0 %v1062
    %v1130 = vpop.f32.mrf.mxu0
    %v1131 = vadd.f32 %v1059, %v1130
    %v1132 = vpop.f32.mrf.mxu0
    %1133 = vdwg.mxu0
    %v1134 = vmax.f32 %v1131, 0.0
    %v1135 = vlaneseq
    %v1136 = vshrl.u32 %v1135, 7
    %v1137 = vsub.s32 2, %v1136
    %v1138 = vrot.slane %v26, %v1137
    %v1140 = vsel %vm1060, %v1134, 0
    %1142 = vmatprep.subr.mxu0 0.0
    %1143 = vmatpush1.msra.mxu0 0.0
    %1144 = vmatprep.subr.mxu0 0.0
    %1145 = vmatpush1.msra.mxu0 0.0
    %1146 = vmatprep.subr.mxu0 0.0
    %1147 = vmatpush1.msra.mxu0 0.0
    %1148 = vmatprep.subr.mxu0 0.0
    %1149 = vmatpush1.msra.mxu0 0.0
    %1150 = vmatprep.subr.mxu0 0.0
    %1151 = vmatpush1.msra.mxu0 0.0
    %1152 = vmatprep.subr.mxu0 0.0
    %1153 = vmatpush1.msra.mxu0 0.0
    %1154 = vmatprep.subr.mxu0 0.0
    %1155 = vmatpush1.msra.mxu0 0.0
    %1156 = vmatprep.subr.mxu0 0.0
    %1157 = vmatpush1.msra.mxu0 0.0
    %1158 = vmatprep.subr.mxu0 0.0
    %1159 = vmatpush1.msra.mxu0 0.0
    %1160 = vmatprep.subr.mxu0 0.0
    %1161 = vmatpush1.msra.mxu0 0.0
    %1162 = vmatprep.subr.mxu0 0.0
    %1163 = vmatpush1.msra.mxu0 0.0
    %1164 = vmatprep.subr.mxu0 0.0
    %1165 = vmatpush1.msra.mxu0 0.0
    %1166 = vmatprep.subr.mxu0 0.0
    %1167 = vmatpush1.msra.mxu0 %v25
    %1168 = vmatprep.subr.mxu0 0.0
    %1169 = vmatpush1.msra.mxu0 %v24
    %1170 = vmatprep.subr.mxu0 0.0
    %1171 = vmatpush1.msra.mxu0 %v23
    %1172 = vmatprep.subr.mxu0 0.0
    %1173 = vmatpush1.msra.mxu0 %v22
    %1174 = vmatprep.subr.mxu0 0.0
    %1175 = vmatpush2.msra.mxu0 0.0
    %1176 = vmatprep.subr.mxu0 0.0
    %1177 = vmatpush2.msra.mxu0 0.0
    %1178 = vmatprep.subr.mxu0 0.0
    %1179 = vmatpush2.msra.mxu0 0.0
    %1180 = vmatprep.subr.mxu0 0.0
    %1181 = vmatpush2.msra.mxu0 0.0
    %1182 = vmatprep.subr.mxu0 0.0
    %1183 = vmatpush2.msra.mxu0 0.0
    %1184 = vmatprep.subr.mxu0 0.0
    %1185 = vmatpush2.msra.mxu0 0.0
    %1186 = vmatprep.subr.mxu0 0.0
    %1187 = vmatpush2.msra.mxu0 0.0
    %1188 = vmatprep.subr.mxu0 0.0
    %1189 = vmatpush2.msra.mxu0 0.0
    %1190 = vmatprep.subr.mxu0 0.0
    %1191 = vmatpush2.msra.mxu0 0.0
    %1192 = vmatprep.subr.mxu0 0.0
    %1193 = vmatpush2.msra.mxu0 0.0
    %1194 = vmatprep.subr.mxu0 0.0
    %1195 = vmatpush2.msra.mxu0 0.0
    %1196 = vmatprep.subr.mxu0 0.0
    %1197 = vmatpush2.msra.mxu0 0.0
    %1198 = vmatprep.subr.mxu0 0.0
    %1199 = vmatpush2.msra.mxu0 0.0
    %1200 = vmatprep.subr.mxu0 0.0
    %1201 = vmatpush2.msra.mxu0 0.0
    %1202 = vmatprep.subr.mxu0 0.0
    %1203 = vmatpush2.msra.mxu0 0.0
    %1204 = vmatprep.subr.mxu0 0.0
    %1205 = vmatpush2.msra.mxu0 0.0
    %1206 = vmatprep.mubr.f32.mxu0 0.0
    %1207 = vmatmul.mubr.f32.gmra.mxu0 %v1140
    %v1208 = vpop.f32.mrf.mxu0
    %v1209 = vadd.f32 %v1138, %v1208
    %v1210 = vpop.f32.mrf.mxu0
    %1211 = vdwg.mxu0
    %vm1212 = vcmask 74752
    %1213 = vst.msk [vmem:[#allocation2] sm:$0x3] %vm1212, %v1209
    // Predicated region
    $region18: #{custom_cnn_forward.1} parent=1 // pred_check
      _
    $region19: #{custom_cnn_forward.1} parent=1 // pred_check_branch
      %1215 = sbr.rel (0) target = $region21
    $region20: #{custom_cnn_forward.1} parent=1 // pred_region
      %s1217 = ssub.s32 32, 32
      %1218 = vsyncadd [#allocation3], %s1217
      %s1220 = sshll.u32 [#allocation2], 4
      %s1221 = int_to_ptr.vmem [resolvable:$true] %s1220
      %1223 = dma.vmem_to_hbm [thread:$0]  %s1221, 32, %s4, [#allocation3]
    $region21: #{custom_cnn_forward.1} parent=1 // pred_fallthru
      _
    // Predicated region
    $region22: #{custom_cnn_forward.1} parent=1 // pred_check
      _
    $region23: #{custom_cnn_forward.1} parent=1 // pred_check_branch
      %1225 = sbr.rel (0) target = $region25
    $region24: #{custom_cnn_forward.1} parent=1 // pred_region
      %1226 = dma.done [#allocation3], 32
    $region25: #{custom_cnn_forward.1} parent=1 // pred_fallthru
      _
    %1227 = vsyncpa [#allocation3], 1

</llo_original>
